<compile_context>
chip_gen: v6e
topology: v6e:2x2x1
jax: 0.10.0
libtpu: 0.0.40
codegen_flags: <defaults>
</compile_context>

<pallas_src>
import jax
import jax.numpy as jnp
from jax.experimental import pallas as pl
from jax.experimental.pallas import tpu as pltpu

IN_FEATURES = 12
OUT_FEATURES = 8


def _round_up(n, m):
    return ((n + m - 1) // m) * m


def _pick_tile_rows(bp):
    """bp is a multiple of 128.  Pick the largest row tile (<=2048) that
    divides bp while leaving >= 4 grid steps (double-buffer overlap + v7x
    megacore sharding); fall back to 128-row tiles otherwise."""
    tile = 128
    for cand in (256, 512, 1024, 2048):
        if bp % cand == 0 and bp // cand >= 4:
            tile = cand
    return tile


def bottlenet_u_kernel(x_ref, w_ref, b_ref, o_ref):
    # x_ref: [T, 12], w_ref: [12, 8], b_ref: [1, 8], o_ref: [T, 8]
    x = x_ref[...].astype(jnp.float32)
    w = w_ref[...].astype(jnp.float32)
    # Contraction on the MXU (M=T, K=12, N=8); accumulate in f32.
    logits = jnp.dot(x, w, preferred_element_type=jnp.float32)
    logits = logits + b_ref[...].astype(jnp.float32)              # [T, 8]

    # Numerically stable softmax over the feature axis (dim=1 of [B, 8]).
    m = jnp.max(logits, axis=-1, keepdims=True)                   # [T, 1]
    e = jnp.exp(logits - m)                                       # EUP
    denom = jnp.sum(e, axis=-1, keepdims=True)                    # [T, 1]
    # Exact divide so every row sums to 1 within f32 rounding.
    o_ref[...] = (e / denom).astype(o_ref.dtype)


@jax.jit
def bottlenet_u(x, w, b):
    """x: [B, 12], w: [12, 8], b: [8] -> softmax(x @ w + b, axis=1): [B, 8]."""
    B = x.shape[0]
    Bp = _round_up(max(B, 1), 128)          # bounded padding (< 128 rows)
    tile_rows = _pick_tile_rows(Bp)
    grid = (Bp // tile_rows,)

    # Only pad when needed; for B % 128 == 0 there are zero wrapper copies.
    x_in = jnp.pad(x, ((0, Bp - B), (0, 0))) if Bp != B else x
    b2 = b.reshape(1, OUT_FEATURES)

    in_bytes = jnp.dtype(x.dtype).itemsize
    w_bytes = jnp.dtype(w.dtype).itemsize
    cost = pl.CostEstimate(
        flops=2 * Bp * IN_FEATURES * OUT_FEATURES,
        transcendentals=Bp * OUT_FEATURES,
        bytes_accessed=(Bp * IN_FEATURES + Bp * OUT_FEATURES) * in_bytes
        + (IN_FEATURES * OUT_FEATURES + OUT_FEATURES) * w_bytes,
    )

    out = pl.pallas_call(
        bottlenet_u_kernel,
        out_shape=jax.ShapeDtypeStruct((Bp, OUT_FEATURES), x.dtype),
        grid_spec=pltpu.PrefetchScalarGridSpec(
            num_scalar_prefetch=0,
            grid=grid,
            in_specs=[
                # (tile_rows, 12): 12 equals the full last dim -> legal block.
                pl.BlockSpec((tile_rows, IN_FEATURES), lambda i: (i, 0)),
                pl.BlockSpec((IN_FEATURES, OUT_FEATURES), lambda i: (0, 0)),
                pl.BlockSpec((1, OUT_FEATURES), lambda i: (0, 0)),
            ],
            out_specs=pl.BlockSpec((tile_rows, OUT_FEATURES), lambda i: (i, 0)),
        ),
        compiler_params=pltpu.CompilerParams(
            dimension_semantics=("parallel",),       # megacore sharding on v7x
            vmem_limit_bytes=32 * 1024 * 1024,       # generous; tiles are tiny
        ),
        cost_estimate=cost,
    )(x_in, w, b2)

    return out[:B] if Bp != B else out


def _reference(x, w, b):
    logits = jnp.dot(x, w, precision=jax.lax.Precision.HIGHEST) + b[None, :]
    m = jnp.max(logits, axis=1, keepdims=True)
    e = jnp.exp(logits - m)
    return e / jnp.sum(e, axis=1, keepdims=True)


if __name__ == "__main__":
    key = jax.random.PRNGKey(0)
    kx, kw, kb = jax.random.split(key, 3)

    B = 2
    x = jax.random.normal(kx, (B, IN_FEATURES), dtype=jnp.float32)
    # Deterministic parameter init (Linear(12, 8)): weight [12, 8], bias [8].
    w = jax.random.normal(kw, (IN_FEATURES, OUT_FEATURES), dtype=jnp.float32) * 0.1
    b = jax.random.normal(kb, (OUT_FEATURES,), dtype=jnp.float32) * 0.1

    out = jax.block_until_ready(bottlenet_u(x, w, b))
    ref = _reference(x, w, b)
    assert out.shape == (B, OUT_FEATURES)
    assert jnp.allclose(out, ref, atol=2e-3, rtol=2e-3), "mismatch vs reference (B=2)"
    # Exact normalization -> rows sum to 1 within f32 rounding.
    assert jnp.allclose(jnp.sum(out, axis=1), jnp.ones((B,)), atol=1e-5)

    # Secondary check: padded batch (300 -> 384) with a multi-step grid.
    B2 = 300
    x2 = jax.random.normal(kx, (B2, IN_FEATURES), dtype=jnp.float32)
    out2 = jax.block_until_ready(bottlenet_u(x2, w, b))
    ref2 = _reference(x2, w, b)
    assert out2.shape == (B2, OUT_FEATURES)
    assert jnp.allclose(out2, ref2, atol=2e-3, rtol=2e-3), "mismatch vs reference (B=300)"
    assert jnp.allclose(jnp.sum(out2, axis=1), jnp.ones((B2,)), atol=1e-5)

    print("KERNEL_OK")
</pallas_src>

<mosaic_0001>
module attributes {stable_mosaic.version = 11 : i64} {
  func.func @bottlenet_u_kernel(%arg0: i32, %arg1: memref<128x12xf32, #tpu.memory_space<vmem>>, %arg2: memref<12x8xf32, #tpu.memory_space<vmem>>, %arg3: memref<1x8xf32, #tpu.memory_space<vmem>>, %arg4: memref<128x8xf32, #tpu.memory_space<vmem>>) attributes {dimension_semantics = [#tpu.dimension_semantics<parallel>], iteration_bounds = array<i64: 1>, scalar_prefetch = 0 : i64, scratch_operands = 0 : i64, tpu.core_type = #tpu.core_type<tc>, window_params = [{transform_indices = @transform_0, window_bounds = array<i64: 128, 12>}, {pipeline_mode = #tpu.pipeline_mode<synchronous>, transform_indices = @transform_1, window_bounds = array<i64: 12, 8>}, {pipeline_mode = #tpu.pipeline_mode<synchronous>, transform_indices = @transform_2, window_bounds = array<i64: 1, 8>}, {transform_indices = @transform_3, window_bounds = array<i64: 128, 8>}]} {
    %c0 = arith.constant 0 : index
    %c0_0 = arith.constant 0 : index
    %0 = vector.load %arg1[%c0, %c0_0] : memref<128x12xf32, #tpu.memory_space<vmem>>, vector<128x12xf32>
    %c0_1 = arith.constant 0 : index
    %c0_2 = arith.constant 0 : index
    %1 = vector.load %arg2[%c0_1, %c0_2] : memref<12x8xf32, #tpu.memory_space<vmem>>, vector<12x8xf32>
    %cst = arith.constant dense<0.000000e+00> : vector<128x8xf32>
    %2 = tpu.matmul %0, %1, %cst {dimension_numbers = #tpu.dot_dimension_numbers<[1], [0], [0], [1], [0, 0, 1, 1], [], []>} : vector<128x12xf32>, vector<12x8xf32>, vector<128x8xf32> -> vector<128x8xf32>
    %c0_3 = arith.constant 0 : index
    %c0_4 = arith.constant 0 : index
    %3 = vector.load %arg3[%c0_3, %c0_4] : memref<1x8xf32, #tpu.memory_space<vmem>>, vector<1x8xf32>
    %4 = vector.broadcast %3 : vector<1x8xf32> to vector<128x8xf32>
    %5 = arith.addf %2, %4 : vector<128x8xf32>
    %cst_5 = arith.constant dense<0xFF800000> : vector<128xf32>
    %6 = vector.multi_reduction <maximumf>, %5, %cst_5 [1] : vector<128x8xf32> to vector<128xf32>
    %7 = vector.shape_cast %6 : vector<128xf32> to vector<128x1xf32>
    %8 = vector.broadcast %7 : vector<128x1xf32> to vector<128x8xf32>
    %9 = arith.subf %5, %8 : vector<128x8xf32>
    %10 = math.exp %9 : vector<128x8xf32>
    %cst_6 = arith.constant dense<0.000000e+00> : vector<128xf32>
    %11 = vector.multi_reduction <add>, %10, %cst_6 [1] : vector<128x8xf32> to vector<128xf32>
    %12 = vector.shape_cast %11 : vector<128xf32> to vector<128x1xf32>
    %13 = vector.broadcast %12 : vector<128x1xf32> to vector<128x8xf32>
    %14 = arith.divf %10, %13 : vector<128x8xf32>
    %c0_7 = arith.constant 0 : index
    %c0_8 = arith.constant 0 : index
    %15 = vector.load %arg4[%c0_7, %c0_8] : memref<128x8xf32, #tpu.memory_space<vmem>>, vector<128x8xf32>
    tpu.vector_store %arg4[%c0_7, %c0_8], %14 {strides = array<i32>} : memref<128x8xf32, #tpu.memory_space<vmem>>, vector<128x8xf32>,
    return
  }
  func.func @transform_0(%arg0: i32) -> (i32, i32) {
    %c0_i32 = arith.constant 0 : i32
    %c0_i32_0 = arith.constant 0 : i32
    return %arg0, %c0_i32 : i32, i32
  }
  func.func @transform_1(%arg0: i32) -> (i32, i32) {
    %c0_i32 = arith.constant 0 : i32
    %c0_i32_0 = arith.constant 0 : i32
    %c0_i32_1 = arith.constant 0 : i32
    return %c0_i32, %c0_i32_0 : i32, i32
  }
  func.func @transform_2(%arg0: i32) -> (i32, i32) {
    %c0_i32 = arith.constant 0 : i32
    %c0_i32_0 = arith.constant 0 : i32
    %c0_i32_1 = arith.constant 0 : i32
    return %c0_i32, %c0_i32_0 : i32, i32
  }
  func.func @transform_3(%arg0: i32) -> (i32, i32) {
    %c0_i32 = arith.constant 0 : i32
    %c0_i32_0 = arith.constant 0 : i32
    return %arg0, %c0_i32 : i32, i32
  }
}

</mosaic_0001>

<llo_original>
// kernel: bottlenet_u.1
$region0: #{bottlenet_u.1}
  #allocation0 [shape = 'u32[]', space=smem, size = 0x4, offset = 0x4, fixed_abs, tag = 'smem constant byte address 0x4 - core index']
  #allocation1 [shape = 'u32[144,128]{1,0:T(1,128)}', space=vmem, size = 0x12000, scoped, tag = 'internal scratch']
  %s0 = inlined_call_operand.vmem [shape: f32[128,12], index: 0, kind: input, shape index: {}]
  %s1 = inlined_call_operand.vmem [shape: f32[12,8], index: 1, kind: input, shape index: {}]
  %s2 = inlined_call_operand.vmem [shape: f32[1,8], index: 2, kind: input, shape index: {}]
  %s3 = inlined_call_operand.vmem [shape: f32[128,8], index: 3, kind: output, shape index: {}]
  %s4 = sld [smem:[#allocation0]]
  $region22: #{bottlenet_u.1} parent=0
    _
  %s6 = ssub.s32 1, %s4
  %s7 = scalar_select 0, %s6, %s4
  // Predicated region
  $region2: #{bottlenet_u.1} parent=0 // pred_check
    _
  $region3: #{bottlenet_u.1} parent=0 // pred_check_branch
    %9 = sbr.rel (0) target = $region5
  $region4: #{bottlenet_u.1} parent=0 // pred_region
    _
  $region5: #{bottlenet_u.1} parent=0 // pred_fallthru
    _
  // Predicated region
  $region6: #{bottlenet_u.1} parent=0 // pred_check
    _
  $region7: #{bottlenet_u.1} parent=0 // pred_check_branch
    %11 = sbr.rel (0) target = $region9
  $region8: #{bottlenet_u.1} parent=0 // pred_region
    _
  $region9: #{bottlenet_u.1} parent=0 // pred_fallthru
    _
  // Predicated region
  $region10: #{bottlenet_u.1} parent=0 // pred_check
    _
  $region11: #{bottlenet_u.1} parent=0 // pred_check_branch
    %13 = sbr.rel (0) target = $region13
  $region12: #{bottlenet_u.1} parent=0 // pred_region
    _
  $region13: #{bottlenet_u.1} parent=0 // pred_fallthru
    _
  %v14 = vld [vmem:[%s0] sm:$0xff]
  %v15 = vld [vmem:[%s0 + $0x8] sm:$0xff]
  %v16 = vld [vmem:[%s0 + $0x10] sm:$0xff]
  %v17 = vld [vmem:[%s0 + $0x18] sm:$0xff]
  %v18 = vld [vmem:[%s0 + $0x20] sm:$0xff]
  %v19 = vld [vmem:[%s0 + $0x28] sm:$0xff]
  %v20 = vld [vmem:[%s0 + $0x30] sm:$0xff]
  %v21 = vld [vmem:[%s0 + $0x38] sm:$0xff]
  %v22 = vld [vmem:[%s0 + $0x40] sm:$0xff]
  %v23 = vld [vmem:[%s0 + $0x48] sm:$0xff]
  %v24 = vld [vmem:[%s0 + $0x50] sm:$0xff]
  %v25 = vld [vmem:[%s0 + $0x58] sm:$0xff]
  %v26 = vld [vmem:[%s0 + $0x60] sm:$0xff]
  %v27 = vld [vmem:[%s0 + $0x68] sm:$0xff]
  %v28 = vld [vmem:[%s0 + $0x70] sm:$0xff]
  %v29 = vld [vmem:[%s0 + $0x78] sm:$0xff]
  %v30 = vld [vmem:[%s1] sm:$0xff]
  %v31 = vld [vmem:[%s1 + $0x8] sm:$0xf]
  %v32 = vld [vmem:[%s2] sm:$0x1]
  %v34 = vlaneseq
  %v35 = vshrl.u32 %v34, 7
  %v36 = vsub.s32 0, %v35
  %v37 = vrot.slane %v32, %v36
  %vm39 = vcmask 97280
  %v41 = vsel %vm39, %v14, 0
  %v44 = vsel %vm39, %v15, 0
  %v47 = vsel %vm39, %v16, 0
  %v50 = vsel %vm39, %v17, 0
  %v53 = vsel %vm39, %v18, 0
  %v56 = vsel %vm39, %v19, 0
  %v59 = vsel %vm39, %v20, 0
  %v62 = vsel %vm39, %v21, 0
  %v65 = vsel %vm39, %v22, 0
  %v68 = vsel %vm39, %v23, 0
  %v71 = vsel %vm39, %v24, 0
  %v74 = vsel %vm39, %v25, 0
  %v77 = vsel %vm39, %v26, 0
  %v80 = vsel %vm39, %v27, 0
  %v83 = vsel %vm39, %v28, 0
  %v86 = vsel %vm39, %v29, 0
  %vm88 = vcmask 1043456
  %v90 = vsel %vm88, %v31, 0
  %92 = vmatprep.subr.mxu0 0.0
  %93 = vmatpush1.msra.mxu0 0.0
  %94 = vmatprep.subr.mxu0 0.0
  %95 = vmatpush1.msra.mxu0 0.0
  %96 = vmatprep.subr.mxu0 0.0
  %97 = vmatpush1.msra.mxu0 0.0
  %98 = vmatprep.subr.mxu0 0.0
  %99 = vmatpush1.msra.mxu0 0.0
  %100 = vmatprep.subr.mxu0 0.0
  %101 = vmatpush1.msra.mxu0 0.0
  %102 = vmatprep.subr.mxu0 0.0
  %103 = vmatpush1.msra.mxu0 0.0
  %104 = vmatprep.subr.mxu0 0.0
  %105 = vmatpush1.msra.mxu0 0.0
  %106 = vmatprep.subr.mxu0 0.0
  %107 = vmatpush1.msra.mxu0 0.0
  %108 = vmatprep.subr.mxu0 0.0
  %109 = vmatpush1.msra.mxu0 0.0
  %110 = vmatprep.subr.mxu0 0.0
  %111 = vmatpush1.msra.mxu0 0.0
  %112 = vmatprep.subr.mxu0 0.0
  %113 = vmatpush1.msra.mxu0 0.0
  %114 = vmatprep.subr.mxu0 0.0
  %115 = vmatpush1.msra.mxu0 0.0
  %116 = vmatprep.subr.mxu0 0.0
  %117 = vmatpush1.msra.mxu0 0.0
  %118 = vmatprep.subr.mxu0 0.0
  %119 = vmatpush1.msra.mxu0 0.0
  %120 = vmatprep.subr.mxu0 0.0
  %121 = vmatpush1.msra.mxu0 %v90
  %122 = vmatprep.subr.mxu0 0.0
  %123 = vmatpush1.msra.mxu0 %v30
  %124 = vmatprep.subr.mxu0 0.0
  %125 = vmatpush2.msra.mxu0 0.0
  %126 = vmatprep.subr.mxu0 0.0
  %127 = vmatpush2.msra.mxu0 0.0
  %128 = vmatprep.subr.mxu0 0.0
  %129 = vmatpush2.msra.mxu0 0.0
  %130 = vmatprep.subr.mxu0 0.0
  %131 = vmatpush2.msra.mxu0 0.0
  %132 = vmatprep.subr.mxu0 0.0
  %133 = vmatpush2.msra.mxu0 0.0
  %134 = vmatprep.subr.mxu0 0.0
  %135 = vmatpush2.msra.mxu0 0.0
  %136 = vmatprep.subr.mxu0 0.0
  %137 = vmatpush2.msra.mxu0 0.0
  %138 = vmatprep.subr.mxu0 0.0
  %139 = vmatpush2.msra.mxu0 0.0
  %140 = vmatprep.subr.mxu0 0.0
  %141 = vmatpush2.msra.mxu0 0.0
  %142 = vmatprep.subr.mxu0 0.0
  %143 = vmatpush2.msra.mxu0 0.0
  %144 = vmatprep.subr.mxu0 0.0
  %145 = vmatpush2.msra.mxu0 0.0
  %146 = vmatprep.subr.mxu0 0.0
  %147 = vmatpush2.msra.mxu0 0.0
  %148 = vmatprep.subr.mxu0 0.0
  %149 = vmatpush2.msra.mxu0 0.0
  %150 = vmatprep.subr.mxu0 0.0
  %151 = vmatpush2.msra.mxu0 0.0
  %152 = vmatprep.subr.mxu0 0.0
  %153 = vmatpush2.msra.mxu0 0.0
  %154 = vmatprep.subr.mxu0 0.0
  %155 = vmatpush2.msra.mxu0 0.0
  %156 = vmatprep.mubr.f32.mxu0 0.0
  %157 = vmatmul.mubr.f32.gmra.mxu0 %v41
  %v158 = vpop.f32.mrf.mxu0
  %v159 = vadd.f32 %v37, %v158
  %v160 = vpop.f32.mrf.mxu0
  %161 = vmatprep.mubr.f32.mxu0 0.0
  %162 = vmatmul.mubr.f32.gmra.mxu0 %v44
  %v163 = vpop.f32.mrf.mxu0
  %v164 = vadd.f32 %v37, %v163
  %v165 = vpop.f32.mrf.mxu0
  %166 = vmatprep.mubr.f32.mxu0 0.0
  %167 = vmatmul.mubr.f32.gmra.mxu0 %v47
  %v168 = vpop.f32.mrf.mxu0
  %v169 = vadd.f32 %v37, %v168
  %v170 = vpop.f32.mrf.mxu0
  %171 = vmatprep.mubr.f32.mxu0 0.0
  %172 = vmatmul.mubr.f32.gmra.mxu0 %v50
  %v173 = vpop.f32.mrf.mxu0
  %v174 = vadd.f32 %v37, %v173
  %v175 = vpop.f32.mrf.mxu0
  %176 = vmatprep.mubr.f32.mxu0 0.0
  %177 = vmatmul.mubr.f32.gmra.mxu0 %v53
  %v178 = vpop.f32.mrf.mxu0
  %v179 = vadd.f32 %v37, %v178
  %v180 = vpop.f32.mrf.mxu0
  %181 = vmatprep.mubr.f32.mxu0 0.0
  %182 = vmatmul.mubr.f32.gmra.mxu0 %v56
  %v183 = vpop.f32.mrf.mxu0
  %v184 = vadd.f32 %v37, %v183
  %v185 = vpop.f32.mrf.mxu0
  %186 = vmatprep.mubr.f32.mxu0 0.0
  %187 = vmatmul.mubr.f32.gmra.mxu0 %v59
  %v188 = vpop.f32.mrf.mxu0
  %v189 = vadd.f32 %v37, %v188
  %v190 = vpop.f32.mrf.mxu0
  %191 = vmatprep.mubr.f32.mxu0 0.0
  %192 = vmatmul.mubr.f32.gmra.mxu0 %v62
  %v193 = vpop.f32.mrf.mxu0
  %v194 = vadd.f32 %v37, %v193
  %v195 = vpop.f32.mrf.mxu0
  %196 = vmatprep.mubr.f32.mxu0 0.0
  %197 = vmatmul.mubr.f32.gmra.mxu0 %v65
  %v198 = vpop.f32.mrf.mxu0
  %v199 = vadd.f32 %v37, %v198
  %v200 = vpop.f32.mrf.mxu0
  %201 = vmatprep.mubr.f32.mxu0 0.0
  %202 = vmatmul.mubr.f32.gmra.mxu0 %v68
  %v203 = vpop.f32.mrf.mxu0
  %v204 = vadd.f32 %v37, %v203
  %v205 = vpop.f32.mrf.mxu0
  %206 = vmatprep.mubr.f32.mxu0 0.0
  %207 = vmatmul.mubr.f32.gmra.mxu0 %v71
  %v208 = vpop.f32.mrf.mxu0
  %v209 = vadd.f32 %v37, %v208
  %v210 = vpop.f32.mrf.mxu0
  %211 = vmatprep.mubr.f32.mxu0 0.0
  %212 = vmatmul.mubr.f32.gmra.mxu0 %v74
  %v213 = vpop.f32.mrf.mxu0
  %v214 = vadd.f32 %v37, %v213
  %v215 = vpop.f32.mrf.mxu0
  %216 = vmatprep.mubr.f32.mxu0 0.0
  %217 = vmatmul.mubr.f32.gmra.mxu0 %v77
  %v218 = vpop.f32.mrf.mxu0
  %v219 = vadd.f32 %v37, %v218
  %v220 = vpop.f32.mrf.mxu0
  %221 = vmatprep.mubr.f32.mxu0 0.0
  %222 = vmatmul.mubr.f32.gmra.mxu0 %v80
  %v223 = vpop.f32.mrf.mxu0
  %v224 = vadd.f32 %v37, %v223
  %v225 = vpop.f32.mrf.mxu0
  %226 = vmatprep.mubr.f32.mxu0 0.0
  %227 = vmatmul.mubr.f32.gmra.mxu0 %v83
  %v228 = vpop.f32.mrf.mxu0
  %v229 = vadd.f32 %v37, %v228
  %v230 = vpop.f32.mrf.mxu0
  %231 = vmatprep.mubr.f32.mxu0 0.0
  %232 = vmatmul.mubr.f32.gmra.mxu0 %v86
  %v233 = vpop.f32.mrf.mxu0
  %v234 = vadd.f32 %v37, %v233
  %v235 = vpop.f32.mrf.mxu0
  %236 = vdwg.mxu0
  %vm237 = vcmask 64512
  %v238 = vsel %vm237, %v159, -inf
  %239 = vmax.xlane.f32.xlu0 %v238
  %v240 = vpop.xlane.xlu0 %239
  %v241 = vsel %vm237, %v164, -inf
  %242 = vmax.xlane.f32.xlu0 %v241
  %v243 = vpop.xlane.xlu0 %242
  %v244 = vsel %vm237, %v169, -inf
  %245 = vmax.xlane.f32.xlu0 %v244
  %v246 = vpop.xlane.xlu0 %245
  %v247 = vsel %vm237, %v174, -inf
  %248 = vmax.xlane.f32.xlu0 %v247
  %v249 = vpop.xlane.xlu0 %248
  %v250 = vsel %vm237, %v179, -inf
  %251 = vmax.xlane.f32.xlu0 %v250
  %v252 = vpop.xlane.xlu0 %251
  %v253 = vsel %vm237, %v184, -inf
  %254 = vmax.xlane.f32.xlu0 %v253
  %v255 = vpop.xlane.xlu0 %254
  %v256 = vsel %vm237, %v189, -inf
  %257 = vmax.xlane.f32.xlu0 %v256
  %v258 = vpop.xlane.xlu0 %257
  %v259 = vsel %vm237, %v194, -inf
  %260 = vmax.xlane.f32.xlu0 %v259
  %v261 = vpop.xlane.xlu0 %260
  %v262 = vsel %vm237, %v199, -inf
  %263 = vmax.xlane.f32.xlu0 %v262
  %v264 = vpop.xlane.xlu0 %263
  %v265 = vsel %vm237, %v204, -inf
  %266 = vmax.xlane.f32.xlu0 %v265
  %v267 = vpop.xlane.xlu0 %266
  %v268 = vsel %vm237, %v209, -inf
  %269 = vmax.xlane.f32.xlu0 %v268
  %v270 = vpop.xlane.xlu0 %269
  %v271 = vsel %vm237, %v214, -inf
  %272 = vmax.xlane.f32.xlu0 %v271
  %v273 = vpop.xlane.xlu0 %272
  %v274 = vsel %vm237, %v219, -inf
  %275 = vmax.xlane.f32.xlu0 %v274
  %v276 = vpop.xlane.xlu0 %275
  %v277 = vsel %vm237, %v224, -inf
  %278 = vmax.xlane.f32.xlu0 %v277
  %v279 = vpop.xlane.xlu0 %278
  %v280 = vsel %vm237, %v229, -inf
  %281 = vmax.xlane.f32.xlu0 %v280
  %v282 = vpop.xlane.xlu0 %281
  %v283 = vsel %vm237, %v234, -inf
  %284 = vmax.xlane.f32.xlu0 %v283
  %v285 = vpop.xlane.xlu0 %284
  %v286 = vsub.f32 %v159, %v240
  %v287 = vsub.f32 %v164, %v243
  %v288 = vsub.f32 %v169, %v246
  %v289 = vsub.f32 %v174, %v249
  %v290 = vsub.f32 %v179, %v252
  %v291 = vsub.f32 %v184, %v255
  %v292 = vsub.f32 %v189, %v258
  %v293 = vsub.f32 %v194, %v261
  %v294 = vsub.f32 %v199, %v264
  %v295 = vsub.f32 %v204, %v267
  %v296 = vsub.f32 %v209, %v270
  %v297 = vsub.f32 %v214, %v273
  %v298 = vsub.f32 %v219, %v276
  %v299 = vsub.f32 %v224, %v279
  %v300 = vsub.f32 %v229, %v282
  %v301 = vsub.f32 %v234, %v285
  %v302 = vmul.f32 %v286, 1.442695
  %v303 = vpow.pop %v302
  %v304 = vmul.f32 %v287, 1.442695
  %v305 = vpow.pop %v304
  %v306 = vmul.f32 %v288, 1.442695
  %v307 = vpow.pop %v306
  %v308 = vmul.f32 %v289, 1.442695
  %v309 = vpow.pop %v308
  %v310 = vmul.f32 %v290, 1.442695
  %v311 = vpow.pop %v310
  %v312 = vmul.f32 %v291, 1.442695
  %v313 = vpow.pop %v312
  %v314 = vmul.f32 %v292, 1.442695
  %v315 = vpow.pop %v314
  %v316 = vmul.f32 %v293, 1.442695
  %v317 = vpow.pop %v316
  %v318 = vmul.f32 %v294, 1.442695
  %v319 = vpow.pop %v318
  %v320 = vmul.f32 %v295, 1.442695
  %v321 = vpow.pop %v320
  %v322 = vmul.f32 %v296, 1.442695
  %v323 = vpow.pop %v322
  %v324 = vmul.f32 %v297, 1.442695
  %v325 = vpow.pop %v324
  %v326 = vmul.f32 %v298, 1.442695
  %v327 = vpow.pop %v326
  %v328 = vmul.f32 %v299, 1.442695
  %v329 = vpow.pop %v328
  %v330 = vmul.f32 %v300, 1.442695
  %v331 = vpow.pop %v330
  %v332 = vmul.f32 %v301, 1.442695
  %v333 = vpow.pop %v332
  %v334 = vsel %vm237, %v303, 0.0
  %335 = vadd.xlane.f32.xlu0 %v334
  %v336 = vpop.xlane.xlu0 %335
  %v337 = vsel %vm237, %v305, 0.0
  %338 = vadd.xlane.f32.xlu0 %v337
  %v339 = vpop.xlane.xlu0 %338
  %v340 = vsel %vm237, %v307, 0.0
  %341 = vadd.xlane.f32.xlu0 %v340
  %v342 = vpop.xlane.xlu0 %341
  %v343 = vsel %vm237, %v309, 0.0
  %344 = vadd.xlane.f32.xlu0 %v343
  %v345 = vpop.xlane.xlu0 %344
  %v346 = vsel %vm237, %v311, 0.0
  %347 = vadd.xlane.f32.xlu0 %v346
  %v348 = vpop.xlane.xlu0 %347
  %v349 = vsel %vm237, %v313, 0.0
  %350 = vadd.xlane.f32.xlu0 %v349
  %v351 = vpop.xlane.xlu0 %350
  %v352 = vsel %vm237, %v315, 0.0
  %353 = vadd.xlane.f32.xlu0 %v352
  %v354 = vpop.xlane.xlu0 %353
  %v355 = vsel %vm237, %v317, 0.0
  %356 = vadd.xlane.f32.xlu0 %v355
  %v357 = vpop.xlane.xlu0 %356
  %v358 = vsel %vm237, %v319, 0.0
  %359 = vadd.xlane.f32.xlu0 %v358
  %v360 = vpop.xlane.xlu0 %359
  %v361 = vsel %vm237, %v321, 0.0
  %362 = vadd.xlane.f32.xlu0 %v361
  %v363 = vpop.xlane.xlu0 %362
  %v364 = vsel %vm237, %v323, 0.0
  %365 = vadd.xlane.f32.xlu0 %v364
  %v366 = vpop.xlane.xlu0 %365
  %v367 = vsel %vm237, %v325, 0.0
  %368 = vadd.xlane.f32.xlu0 %v367
  %v369 = vpop.xlane.xlu0 %368
  %v370 = vsel %vm237, %v327, 0.0
  %371 = vadd.xlane.f32.xlu0 %v370
  %v372 = vpop.xlane.xlu0 %371
  %v373 = vsel %vm237, %v329, 0.0
  %374 = vadd.xlane.f32.xlu0 %v373
  %v375 = vpop.xlane.xlu0 %374
  %v376 = vsel %vm237, %v331, 0.0
  %377 = vadd.xlane.f32.xlu0 %v376
  %v378 = vpop.xlane.xlu0 %377
  %v379 = vsel %vm237, %v333, 0.0
  %380 = vadd.xlane.f32.xlu0 %v379
  %v381 = vpop.xlane.xlu0 %380
  %v382 = vrcp.pop %v336
  %v383 = vmul.f32 %v303, %v382
  %v384 = vrcp.pop %v339
  %v385 = vmul.f32 %v305, %v384
  %v386 = vrcp.pop %v342
  %v387 = vmul.f32 %v307, %v386
  %v388 = vrcp.pop %v345
  %v389 = vmul.f32 %v309, %v388
  %v390 = vrcp.pop %v348
  %v391 = vmul.f32 %v311, %v390
  %v392 = vrcp.pop %v351
  %v393 = vmul.f32 %v313, %v392
  %v394 = vrcp.pop %v354
  %v395 = vmul.f32 %v315, %v394
  %v396 = vrcp.pop %v357
  %v397 = vmul.f32 %v317, %v396
  %v398 = vrcp.pop %v360
  %v399 = vmul.f32 %v319, %v398
  %v400 = vrcp.pop %v363
  %v401 = vmul.f32 %v321, %v400
  %v402 = vrcp.pop %v366
  %v403 = vmul.f32 %v323, %v402
  %v404 = vrcp.pop %v369
  %v405 = vmul.f32 %v325, %v404
  %v406 = vrcp.pop %v372
  %v407 = vmul.f32 %v327, %v406
  %v408 = vrcp.pop %v375
  %v409 = vmul.f32 %v329, %v408
  %v410 = vrcp.pop %v378
  %v411 = vmul.f32 %v331, %v410
  %v412 = vrcp.pop %v381
  %v413 = vmul.f32 %v333, %v412
  %414 = vst.msk [vmem:[%s3] sm:$0xff] %vm237, %v383
  %415 = vst.msk [vmem:[%s3 + $0x8] sm:$0xff] %vm237, %v385
  %416 = vst.msk [vmem:[%s3 + $0x10] sm:$0xff] %vm237, %v387
  %417 = vst.msk [vmem:[%s3 + $0x18] sm:$0xff] %vm237, %v389
  %418 = vst.msk [vmem:[%s3 + $0x20] sm:$0xff] %vm237, %v391
  %419 = vst.msk [vmem:[%s3 + $0x28] sm:$0xff] %vm237, %v393
  %420 = vst.msk [vmem:[%s3 + $0x30] sm:$0xff] %vm237, %v395
  %421 = vst.msk [vmem:[%s3 + $0x38] sm:$0xff] %vm237, %v397
  %422 = vst.msk [vmem:[%s3 + $0x40] sm:$0xff] %vm237, %v399
  %423 = vst.msk [vmem:[%s3 + $0x48] sm:$0xff] %vm237, %v401
  %424 = vst.msk [vmem:[%s3 + $0x50] sm:$0xff] %vm237, %v403
  %425 = vst.msk [vmem:[%s3 + $0x58] sm:$0xff] %vm237, %v405
  %426 = vst.msk [vmem:[%s3 + $0x60] sm:$0xff] %vm237, %v407
  %427 = vst.msk [vmem:[%s3 + $0x68] sm:$0xff] %vm237, %v409
  %428 = vst.msk [vmem:[%s3 + $0x70] sm:$0xff] %vm237, %v411
  %429 = vst.msk [vmem:[%s3 + $0x78] sm:$0xff] %vm237, %v413
  // Predicated region
  $region14: #{bottlenet_u.1} parent=0 // pred_check
    _
  $region15: #{bottlenet_u.1} parent=0 // pred_check_branch
    %431 = sbr.rel (0) target = $region17
  $region16: #{bottlenet_u.1} parent=0 // pred_region
    _
  $region17: #{bottlenet_u.1} parent=0 // pred_fallthru
    _
  // Predicated region
  $region18: #{bottlenet_u.1} parent=0 // pred_check
    _
  $region19: #{bottlenet_u.1} parent=0 // pred_check_branch
    %433 = sbr.rel (0) target = $region21
  $region20: #{bottlenet_u.1} parent=0 // pred_region
    _
  $region21: #{bottlenet_u.1} parent=0 // pred_fallthru
    _

</llo_original>
